<compile_context>
chip_gen: v5e
topology: v5e:2x2
jax: 0.10.0
libtpu: 0.0.40
codegen_flags: <defaults>
</compile_context>

<pallas_src>
import functools

import jax
import jax.numpy as jnp
from jax import lax
from jax.experimental import pallas as pl
from jax.experimental.pallas import tpu as pltpu


def _dtw_kernel(dist_ref, out_ref, *, lam, relaxation):
    """DTW-only kernel.

    dist_ref: (S_blk, T, T, 8, 128) f32.  dist_ref[s, i, j] is the cosine
              distance between support frame i and query frame j for the
              8*128 pairs of sub-slab s.
    out_ref:  (1, S_blk, 8, 128) f32.  DTW score per pair for the direction
              selected by grid axis 1 (0 = forward, 1 = time-flipped).
    """
    S, T = dist_ref.shape[0], dist_ref.shape[1]
    SUB, LANE = dist_ref.shape[3], dist_ref.shape[4]
    inv_lam = 1.0 / lam
    zero = jnp.zeros((SUB, LANE), jnp.float32)
    direction = pl.program_id(1)

    def softmin2(a, b):
        m = jnp.minimum(a, b)
        if not relaxation:
            return m
        # -lam*log(e^{-a/lam}+e^{-b/lam}) = min - lam*log(1 + e^{-|a-b|/lam})
        # (one exp instead of two; argument of exp is <= 0, no overflow)
        return m - lam * jnp.log(1.0 + jnp.exp(-jnp.abs(a - b) * inv_lam))

    def softmin3(a, b, c):
        m = jnp.minimum(jnp.minimum(a, b), c)
        if not relaxation:
            return m
        z = (jnp.exp((m - a) * inv_lam) + jnp.exp((m - b) * inv_lam)
             + jnp.exp((m - c) * inv_lam))           # args <= 0, stable
        return m - lam * jnp.log(z)

    def run_dtw(flip):
        # Loop over 8-sublane sub-slabs: keeps all carried values one vreg
        # wide no matter how big the DMA block (S_blk) is.
        for s in range(S):
            def dist_row(l, s=s, flip=flip):
                # (T, 8, 128): all query-frame distances for support frame l
                return dist_ref[s, (T - 1) - l] if flip else dist_ref[s, l]

            def dcol(drow, m, flip=flip):
                if m == 0 or m == T + 1:             # zero-padded columns
                    return zero
                j = m - 1
                return drow[(T - 1) - j] if flip else drow[j]

            # row l = 0: plain cumulative sum over the zero-padded columns
            drow0 = dist_row(0)
            row = [zero]
            for m in range(1, T + 2):
                row.append(row[m - 1] + dcol(drow0, m))
            prev0 = tuple(row)                        # tuple carry (no stack)

            def l_body(l, prev):
                drow = dist_row(l)
                cur = [zero]
                for m in range(1, T + 2):
                    if m == 1 or m == T + 1:
                        v = softmin3(prev[m - 1], cur[m - 1], prev[m])
                    else:
                        v = softmin2(prev[m - 1], cur[m - 1])
                    cur.append(v + dcol(drow, m))
                return tuple(cur)

            final = lax.fori_loop(1, T, l_body, prev0)
            out_ref[0, s] = final[T + 1]

    @pl.when(direction == 0)
    def _():
        run_dtw(False)

    @pl.when(direction == 1)
    def _():
        run_dtw(True)


def _cross_entropy(logits, labels):
    # nn.CrossEntropyLoss (mean reduction) on integer labels
    logits = logits.astype(jnp.float32)
    logz = jax.nn.logsumexp(logits, axis=-1)
    picked = jnp.take_along_axis(logits, labels[:, None], axis=-1)[:, 0]
    return jnp.mean(logz - picked)


def otam_loss(supp, query, query_ys, *, lam=0.1, relaxation=True):
    """supp: (B, num_supp, T, D); query: (B, num_query, T, D);
    query_ys: (B*num_query,) int labels in [0, num_supp)."""
    B, num_supp, T, D = supp.shape
    num_query = query.shape[1]
    assert query.shape[0] == B and query.shape[2] == T and query.shape[3] == D
    N = B * num_query * num_supp
    eps = 1e-8

    supp32 = supp.astype(jnp.float32)
    query32 = query.astype(jnp.float32)

    # ---- Stage 1 (XLA glue, MXU): pairwise cosine distances on COMPACT data.
    # dots[i, j, b, q, s] = <supp[b, s, i, :], query[b, q, j, :]>
    # TODO(synk): for very large T*D the dist write could be folded into the
    # Pallas kernel as an in-kernel jnp.dot; not needed at few-shot sizes.
    dots = jnp.einsum('bsid,bqjd->ijbqs', supp32, query32,
                      preferred_element_type=jnp.float32,
                      precision=jax.lax.Precision.HIGHEST)
    sn = jnp.sqrt(jnp.sum(supp32 * supp32, axis=-1))    # (B, ns, T)
    qn = jnp.sqrt(jnp.sum(query32 * query32, axis=-1))  # (B, nq, T)
    denom = (jnp.transpose(sn, (2, 0, 1))[:, None, :, None, :] *   # (T,1,B,1,ns)
             jnp.transpose(qn, (2, 0, 1))[None, :, :, :, None])    # (1,T,B,nq,1)
    # torch.F.cosine_similarity convention: dot / max(|x|*|y|, eps)
    dist = 1.0 - dots / jnp.maximum(denom, eps)          # (T, T, B, nq, ns)
    dist = dist.reshape(T, T, N)                         # pair n = (b*nq+q)*ns+s

    # ---- Stage 2: pack pairs into (slab, T, T, 8, 128) sub-slabs -----------
    SUB, LANE = 8, 128
    pairs_per_slab = SUB * LANE                          # 1024 pairs per slab
    n_slab = pl.cdiv(N, pairs_per_slab)
    slab_bytes = T * T * pairs_per_slab * 4
    # DMA block = S_blk slabs; keep double-buffered input <= ~16 MiB so the
    # scoped-VMEM defaults are safe on v5e (16 MiB) / v6e / v7x (32 MiB).
    max_blk = max(1, min(8, (8 * 1024 * 1024) // max(slab_bytes, 1)))
    best = None
    for s_cand in range(1, min(max_blk, n_slab) + 1):
        padded = pl.cdiv(n_slab, s_cand) * s_cand
        if best is None or padded < best[0] or (padded == best[0] and s_cand > best[1]):
            best = (padded, s_cand)
    n_slab_pad, S_blk = best
    num_blocks = n_slab_pad // S_blk
    Npad = n_slab_pad * pairs_per_slab

    if Npad != N:
        # Padded pair slots get dist == 0 everywhere -> finite DTW, sliced away.
        dist = jnp.pad(dist, ((0, 0), (0, 0), (0, Npad - N)))
    dist = dist.reshape(T, T, n_slab_pad, SUB, LANE)
    dist = jnp.transpose(dist, (2, 0, 1, 3, 4))          # (slab, T, T, 8, 128)

    kernel = functools.partial(_dtw_kernel, lam=float(lam),
                               relaxation=bool(relaxation))
    vmem_need = 2 * S_blk * slab_bytes + 4 * S_blk * pairs_per_slab * 4 + (1 << 20)
    vmem_limit = max(vmem_need, 32 << 20) if vmem_need > (16 << 20) else None

    # Grid: (pair blocks, direction).  Trailing direction axis means consecutive
    # steps reuse the same dist block (no re-DMA) and there are always >= 2
    # parallel steps, so both v7x TensorCores get work even when num_blocks == 1.
    tam_pair = pl.pallas_call(
        kernel,
        out_shape=jax.ShapeDtypeStruct((2, n_slab_pad, SUB, LANE), jnp.float32),
        grid_spec=pltpu.PrefetchScalarGridSpec(
            num_scalar_prefetch=0,
            grid=(num_blocks, 2),
            in_specs=[pl.BlockSpec((S_blk, T, T, SUB, LANE),
                                   lambda i, d: (i, 0, 0, 0, 0))],
            out_specs=pl.BlockSpec((1, S_blk, SUB, LANE),
                                   lambda i, d: (d, i, 0, 0))),
        compiler_params=pltpu.CompilerParams(
            dimension_semantics=("parallel", "parallel"),
            vmem_limit_bytes=vmem_limit),
    )(dist)

    tam1 = tam_pair[0].reshape(-1)[:N].reshape(B * num_query, num_supp)
    tam2 = tam_pair[1].reshape(-1)[:N].reshape(B * num_query, num_supp)

    loss1 = _cross_entropy(-tam1, query_ys)
    loss2 = _cross_entropy(-tam2, query_ys)
    loss = (loss1 + loss2) / 2.0
    tam = (tam1 + tam2) / 2.0
    return loss, tam


def _otam_loss_reference(supp, query, query_ys, lam=0.1, relaxation=True):
    """Pure-JAX reference (torch denominator convention, stabilised soft-min)."""
    B, num_supp, T, D = supp.shape
    num_query = query.shape[1]
    eps = 1e-8
    s = jnp.broadcast_to(supp[:, None], (B, num_query, num_supp, T, D)) \
        .reshape(-1, T, D).astype(jnp.float32)
    q = jnp.broadcast_to(query[:, :, None], (B, num_query, num_supp, T, D)) \
        .reshape(-1, T, D).astype(jnp.float32)
    dots = jnp.einsum('nid,njd->nij', s, q, precision=jax.lax.Precision.HIGHEST)
    denom = (jnp.linalg.norm(s, axis=-1)[:, :, None] *
             jnp.linalg.norm(q, axis=-1)[:, None, :])
    dist = 1.0 - dots / jnp.maximum(denom, eps)          # (N, T, T)

    def dtw(d):
        dpad = jnp.pad(d, ((0, 0), (0, 0), (1, 1)))
        zero = jnp.zeros((d.shape[0],), jnp.float32)
        prev = [zero]
        for m in range(1, T + 2):
            prev.append(prev[m - 1] + dpad[:, 0, m])
        for l in range(1, T):
            cur = [zero]
            for m in range(1, T + 2):
                cands = [prev[m - 1], cur[m - 1]]
                if m == 1 or m == T + 1:
                    cands.append(prev[m])
                cs = jnp.stack(cands, axis=0)
                mn = jnp.min(cs, axis=0)
                if relaxation:
                    val = mn - lam * jnp.log(jnp.sum(jnp.exp((mn - cs) / lam), axis=0))
                else:
                    val = mn
                cur.append(val + dpad[:, l, m])
            prev = cur
        return prev[T + 1]

    tam1 = dtw(dist).reshape(-1, num_supp)
    tam2 = dtw(dist[:, ::-1, ::-1]).reshape(-1, num_supp)
    loss1 = _cross_entropy(-tam1, query_ys)
    loss2 = _cross_entropy(-tam2, query_ys)
    return (loss1 + loss2) / 2.0, (tam1 + tam2) / 2.0


if __name__ == "__main__":
    key = jax.random.PRNGKey(0)
    B, num_supp, num_query, T, D = 2, 3, 4, 8, 32
    k1, k2, k3 = jax.random.split(key, 3)
    supp = jax.random.normal(k1, (B, num_supp, T, D), jnp.float32)
    query = jax.random.normal(k2, (B, num_query, T, D), jnp.float32)
    query_ys = jax.random.randint(k3, (B * num_query,), 0, num_supp)

    loss, tam = jax.jit(otam_loss)(supp, query, query_ys)
    jax.block_until_ready((loss, tam))

    ref_loss, ref_tam = jax.jit(_otam_loss_reference)(supp, query, query_ys)
    jax.block_until_ready((ref_loss, ref_tam))

    ok = bool(jnp.allclose(loss, ref_loss, rtol=2e-3, atol=2e-3)) and \
         bool(jnp.allclose(tam, ref_tam, rtol=2e-3, atol=2e-3))
    if not ok:
        raise SystemExit(f"mismatch vs pure-JAX reference: loss {loss} vs {ref_loss}")
    print("KERNEL_OK")
</pallas_src>

<mosaic_0001>
module attributes {stable_mosaic.version = 11 : i64} {
  func.func @_dtw_kernel(%arg0: i32, %arg1: i32, %arg2: memref<1x8x8x8x128xf32, #tpu.memory_space<vmem>>, %arg3: memref<1x1x8x128xf32, #tpu.memory_space<vmem>>) attributes {dimension_semantics = [#tpu.dimension_semantics<parallel>, #tpu.dimension_semantics<parallel>], iteration_bounds = array<i64: 1, 2>, scalar_prefetch = 0 : i64, scratch_operands = 0 : i64, tpu.core_type = #tpu.core_type<tc>, window_params = [{transform_indices = @transform_0, window_bounds = array<i64: 1, 8, 8, 8, 128>}, {transform_indices = @transform_1, window_bounds = array<i64: 1, 1, 8, 128>}]} {
    %cst = arith.constant 0.000000e+00 : f32
    %0 = vector.broadcast %cst : f32 to vector<8x128xf32>
    %c0_i32 = arith.constant 0 : i32
    %1 = arith.cmpi eq, %arg1, %c0_i32 : i32
    %2 = arith.extui %1 : i1 to i32
    %c0_i32_0 = arith.constant 0 : i32
    %3 = arith.cmpi ne, %2, %c0_i32_0 : i32
    scf.if %3 {
      %c0 = arith.constant 0 : index
      %c0_2 = arith.constant 0 : index
      %c0_3 = arith.constant 0 : index
      %c0_4 = arith.constant 0 : index
      %c0_5 = arith.constant 0 : index
      %7 = vector.load %arg2[%c0, %c0_2, %c0_3, %c0_4, %c0_5] : memref<1x8x8x8x128xf32, #tpu.memory_space<vmem>>, vector<1x1x8x8x128xf32>
      %8 = vector.shape_cast %7 : vector<1x1x8x8x128xf32> to vector<8x8x128xf32>
      %9 = vector.extract_strided_slice %8 {offsets = [0, 0, 0], sizes = [1, 8, 128], strides = [1, 1, 1]} : vector<8x8x128xf32> to vector<1x8x128xf32>
      %10 = vector.shape_cast %9 : vector<1x8x128xf32> to vector<8x128xf32>
      %11 = arith.addf %0, %10 : vector<8x128xf32>
      %12 = vector.extract_strided_slice %8 {offsets = [1, 0, 0], sizes = [1, 8, 128], strides = [1, 1, 1]} : vector<8x8x128xf32> to vector<1x8x128xf32>
      %13 = vector.shape_cast %12 : vector<1x8x128xf32> to vector<8x128xf32>
      %14 = arith.addf %11, %13 : vector<8x128xf32>
      %15 = vector.extract_strided_slice %8 {offsets = [2, 0, 0], sizes = [1, 8, 128], strides = [1, 1, 1]} : vector<8x8x128xf32> to vector<1x8x128xf32>
      %16 = vector.shape_cast %15 : vector<1x8x128xf32> to vector<8x128xf32>
      %17 = arith.addf %14, %16 : vector<8x128xf32>
      %18 = vector.extract_strided_slice %8 {offsets = [3, 0, 0], sizes = [1, 8, 128], strides = [1, 1, 1]} : vector<8x8x128xf32> to vector<1x8x128xf32>
      %19 = vector.shape_cast %18 : vector<1x8x128xf32> to vector<8x128xf32>
      %20 = arith.addf %17, %19 : vector<8x128xf32>
      %21 = vector.extract_strided_slice %8 {offsets = [4, 0, 0], sizes = [1, 8, 128], strides = [1, 1, 1]} : vector<8x8x128xf32> to vector<1x8x128xf32>
      %22 = vector.shape_cast %21 : vector<1x8x128xf32> to vector<8x128xf32>
      %23 = arith.addf %20, %22 : vector<8x128xf32>
      %24 = vector.extract_strided_slice %8 {offsets = [5, 0, 0], sizes = [1, 8, 128], strides = [1, 1, 1]} : vector<8x8x128xf32> to vector<1x8x128xf32>
      %25 = vector.shape_cast %24 : vector<1x8x128xf32> to vector<8x128xf32>
      %26 = arith.addf %23, %25 : vector<8x128xf32>
      %27 = vector.extract_strided_slice %8 {offsets = [6, 0, 0], sizes = [1, 8, 128], strides = [1, 1, 1]} : vector<8x8x128xf32> to vector<1x8x128xf32>
      %28 = vector.shape_cast %27 : vector<1x8x128xf32> to vector<8x128xf32>
      %29 = arith.addf %26, %28 : vector<8x128xf32>
      %30 = vector.extract_strided_slice %8 {offsets = [7, 0, 0], sizes = [1, 8, 128], strides = [1, 1, 1]} : vector<8x8x128xf32> to vector<1x8x128xf32>
      %31 = vector.shape_cast %30 : vector<1x8x128xf32> to vector<8x128xf32>
      %32 = arith.addf %29, %31 : vector<8x128xf32>
      %33 = arith.addf %32, %0 : vector<8x128xf32>
      %c1_i32_6 = arith.constant 1 : i32
      %c7_i32 = arith.constant 7 : i32
      %34 = arith.addi %c1_i32_6, %c7_i32 : i32
      %c1_i32_7 = arith.constant 1 : i32
      %35:10 = scf.for %arg4 = %c1_i32_6 to %34 step %c1_i32_7 iter_args(%arg5 = %0, %arg6 = %11, %arg7 = %14, %arg8 = %17, %arg9 = %20, %arg10 = %23, %arg11 = %26, %arg12 = %29, %arg13 = %32, %arg14 = %33) -> (vector<8x128xf32>, vector<8x128xf32>, vector<8x128xf32>, vector<8x128xf32>, vector<8x128xf32>, vector<8x128xf32>, vector<8x128xf32>, vector<8x128xf32>, vector<8x128xf32>, vector<8x128xf32>)  : i32 {
        %c0_13 = arith.constant 0 : index
        %39 = arith.index_cast %arg4 : i32 to index
        %c0_14 = arith.constant 0 : index
        %c0_15 = arith.constant 0 : index
        %c0_16 = arith.constant 0 : index
        %40 = vector.load %arg2[%c0_13, %39, %c0_14, %c0_15, %c0_16] : memref<1x8x8x8x128xf32, #tpu.memory_space<vmem>>, vector<1x1x8x8x128xf32>
        %41 = vector.shape_cast %40 : vector<1x1x8x8x128xf32> to vector<8x8x128xf32>
        %42 = arith.minimumf %arg5, %0 : vector<8x128xf32>
        %43 = arith.minimumf %42, %arg6 : vector<8x128xf32>
        %44 = arith.subf %43, %arg5 : vector<8x128xf32>
        %cst_17 = arith.constant 1.000000e+01 : f32
        %45 = vector.broadcast %cst_17 : f32 to vector<8x128xf32>
        %46 = arith.mulf %44, %45 : vector<8x128xf32>
        %47 = math.exp %46 : vector<8x128xf32>
        %48 = arith.subf %43, %0 : vector<8x128xf32>
        %cst_18 = arith.constant 1.000000e+01 : f32
        %49 = vector.broadcast %cst_18 : f32 to vector<8x128xf32>
        %50 = arith.mulf %48, %49 : vector<8x128xf32>
        %51 = math.exp %50 : vector<8x128xf32>
        %52 = arith.addf %47, %51 : vector<8x128xf32>
        %53 = arith.subf %43, %arg6 : vector<8x128xf32>
        %cst_19 = arith.constant 1.000000e+01 : f32
        %54 = vector.broadcast %cst_19 : f32 to vector<8x128xf32>
        %55 = arith.mulf %53, %54 : vector<8x128xf32>
        %56 = math.exp %55 : vector<8x128xf32>
        %57 = arith.addf %52, %56 : vector<8x128xf32>
        %58 = math.log %57 : vector<8x128xf32>
        %cst_20 = arith.constant 1.000000e-01 : f32
        %59 = vector.broadcast %cst_20 : f32 to vector<8x128xf32>
        %60 = arith.mulf %59, %58 : vector<8x128xf32>
        %61 = arith.subf %43, %60 : vector<8x128xf32>
        %62 = vector.extract_strided_slice %41 {offsets = [0, 0, 0], sizes = [1, 8, 128], strides = [1, 1, 1]} : vector<8x8x128xf32> to vector<1x8x128xf32>
        %63 = vector.shape_cast %62 : vector<1x8x128xf32> to vector<8x128xf32>
        %64 = arith.addf %61, %63 : vector<8x128xf32>
        %65 = arith.minimumf %arg6, %64 : vector<8x128xf32>
        %66 = arith.subf %arg6, %64 : vector<8x128xf32>
        %67 = math.absf %66 : vector<8x128xf32>
        %cst_21 = arith.constant 0.000000e+00 : f32
        %68 = vector.broadcast %cst_21 : f32 to vector<8x128xf32>
        %69 = arith.subf %68, %67 : vector<8x128xf32>
        %cst_22 = arith.constant 1.000000e+01 : f32
        %70 = vector.broadcast %cst_22 : f32 to vector<8x128xf32>
        %71 = arith.mulf %69, %70 : vector<8x128xf32>
        %72 = math.exp %71 : vector<8x128xf32>
        %cst_23 = arith.constant 1.000000e+00 : f32
        %73 = vector.broadcast %cst_23 : f32 to vector<8x128xf32>
        %74 = arith.addf %73, %72 : vector<8x128xf32>
        %75 = math.log %74 : vector<8x128xf32>
        %cst_24 = arith.constant 1.000000e-01 : f32
        %76 = vector.broadcast %cst_24 : f32 to vector<8x128xf32>
        %77 = arith.mulf %76, %75 : vector<8x128xf32>
        %78 = arith.subf %65, %77 : vector<8x128xf32>
        %79 = vector.extract_strided_slice %41 {offsets = [1, 0, 0], sizes = [1, 8, 128], strides = [1, 1, 1]} : vector<8x8x128xf32> to vector<1x8x128xf32>
        %80 = vector.shape_cast %79 : vector<1x8x128xf32> to vector<8x128xf32>
        %81 = arith.addf %78, %80 : vector<8x128xf32>
        %82 = arith.minimumf %arg7, %81 : vector<8x128xf32>
        %83 = arith.subf %arg7, %81 : vector<8x128xf32>
        %84 = math.absf %83 : vector<8x128xf32>
        %cst_25 = arith.constant 0.000000e+00 : f32
        %85 = vector.broadcast %cst_25 : f32 to vector<8x128xf32>
        %86 = arith.subf %85, %84 : vector<8x128xf32>
        %cst_26 = arith.constant 1.000000e+01 : f32
        %87 = vector.broadcast %cst_26 : f32 to vector<8x128xf32>
        %88 = arith.mulf %86, %87 : vector<8x128xf32>
        %89 = math.exp %88 : vector<8x128xf32>
        %cst_27 = arith.constant 1.000000e+00 : f32
        %90 = vector.broadcast %cst_27 : f32 to vector<8x128xf32>
        %91 = arith.addf %90, %89 : vector<8x128xf32>
        %92 = math.log %91 : vector<8x128xf32>
        %cst_28 = arith.constant 1.000000e-01 : f32
        %93 = vector.broadcast %cst_28 : f32 to vector<8x128xf32>
        %94 = arith.mulf %93, %92 : vector<8x128xf32>
        %95 = arith.subf %82, %94 : vector<8x128xf32>
        %96 = vector.extract_strided_slice %41 {offsets = [2, 0, 0], sizes = [1, 8, 128], strides = [1, 1, 1]} : vector<8x8x128xf32> to vector<1x8x128xf32>
        %97 = vector.shape_cast %96 : vector<1x8x128xf32> to vector<8x128xf32>
        %98 = arith.addf %95, %97 : vector<8x128xf32>
        %99 = arith.minimumf %arg8, %98 : vector<8x128xf32>
        %100 = arith.subf %arg8, %98 : vector<8x128xf32>
        %101 = math.absf %100 : vector<8x128xf32>
        %cst_29 = arith.constant 0.000000e+00 : f32
        %102 = vector.broadcast %cst_29 : f32 to vector<8x128xf32>
        %103 = arith.subf %102, %101 : vector<8x128xf32>
        %cst_30 = arith.constant 1.000000e+01 : f32
        %104 = vector.broadcast %cst_30 : f32 to vector<8x128xf32>
        %105 = arith.mulf %103, %104 : vector<8x128xf32>
        %106 = math.exp %105 : vector<8x128xf32>
        %cst_31 = arith.constant 1.000000e+00 : f32
        %107 = vector.broadcast %cst_31 : f32 to vector<8x128xf32>
        %108 = arith.addf %107, %106 : vector<8x128xf32>
        %109 = math.log %108 : vector<8x128xf32>
        %cst_32 = arith.constant 1.000000e-01 : f32
        %110 = vector.broadcast %cst_32 : f32 to vector<8x128xf32>
        %111 = arith.mulf %110, %109 : vector<8x128xf32>
        %112 = arith.subf %99, %111 : vector<8x128xf32>
        %113 = vector.extract_strided_slice %41 {offsets = [3, 0, 0], sizes = [1, 8, 128], strides = [1, 1, 1]} : vector<8x8x128xf32> to vector<1x8x128xf32>
        %114 = vector.shape_cast %113 : vector<1x8x128xf32> to vector<8x128xf32>
        %115 = arith.addf %112, %114 : vector<8x128xf32>
        %116 = arith.minimumf %arg9, %115 : vector<8x128xf32>
        %117 = arith.subf %arg9, %115 : vector<8x128xf32>
        %118 = math.absf %117 : vector<8x128xf32>
        %cst_33 = arith.constant 0.000000e+00 : f32
        %119 = vector.broadcast %cst_33 : f32 to vector<8x128xf32>
        %120 = arith.subf %119, %118 : vector<8x128xf32>
        %cst_34 = arith.constant 1.000000e+01 : f32
        %121 = vector.broadcast %cst_34 : f32 to vector<8x128xf32>
        %122 = arith.mulf %120, %121 : vector<8x128xf32>
        %123 = math.exp %122 : vector<8x128xf32>
        %cst_35 = arith.constant 1.000000e+00 : f32
        %124 = vector.broadcast %cst_35 : f32 to vector<8x128xf32>
        %125 = arith.addf %124, %123 : vector<8x128xf32>
        %126 = math.log %125 : vector<8x128xf32>
        %cst_36 = arith.constant 1.000000e-01 : f32
        %127 = vector.broadcast %cst_36 : f32 to vector<8x128xf32>
        %128 = arith.mulf %127, %126 : vector<8x128xf32>
        %129 = arith.subf %116, %128 : vector<8x128xf32>
        %130 = vector.extract_strided_slice %41 {offsets = [4, 0, 0], sizes = [1, 8, 128], strides = [1, 1, 1]} : vector<8x8x128xf32> to vector<1x8x128xf32>
        %131 = vector.shape_cast %130 : vector<1x8x128xf32> to vector<8x128xf32>
        %132 = arith.addf %129, %131 : vector<8x128xf32>
        %133 = arith.minimumf %arg10, %132 : vector<8x128xf32>
        %134 = arith.subf %arg10, %132 : vector<8x128xf32>
        %135 = math.absf %134 : vector<8x128xf32>
        %cst_37 = arith.constant 0.000000e+00 : f32
        %136 = vector.broadcast %cst_37 : f32 to vector<8x128xf32>
        %137 = arith.subf %136, %135 : vector<8x128xf32>
        %cst_38 = arith.constant 1.000000e+01 : f32
        %138 = vector.broadcast %cst_38 : f32 to vector<8x128xf32>
        %139 = arith.mulf %137, %138 : vector<8x128xf32>
        %140 = math.exp %139 : vector<8x128xf32>
        %cst_39 = arith.constant 1.000000e+00 : f32
        %141 = vector.broadcast %cst_39 : f32 to vector<8x128xf32>
        %142 = arith.addf %141, %140 : vector<8x128xf32>
        %143 = math.log %142 : vector<8x128xf32>
        %cst_40 = arith.constant 1.000000e-01 : f32
        %144 = vector.broadcast %cst_40 : f32 to vector<8x128xf32>
        %145 = arith.mulf %144, %143 : vector<8x128xf32>
        %146 = arith.subf %133, %145 : vector<8x128xf32>
        %147 = vector.extract_strided_slice %41 {offsets = [5, 0, 0], sizes = [1, 8, 128], strides = [1, 1, 1]} : vector<8x8x128xf32> to vector<1x8x128xf32>
        %148 = vector.shape_cast %147 : vector<1x8x128xf32> to vector<8x128xf32>
        %149 = arith.addf %146, %148 : vector<8x128xf32>
        %150 = arith.minimumf %arg11, %149 : vector<8x128xf32>
        %151 = arith.subf %arg11, %149 : vector<8x128xf32>
        %152 = math.absf %151 : vector<8x128xf32>
        %cst_41 = arith.constant 0.000000e+00 : f32
        %153 = vector.broadcast %cst_41 : f32 to vector<8x128xf32>
        %154 = arith.subf %153, %152 : vector<8x128xf32>
        %cst_42 = arith.constant 1.000000e+01 : f32
        %155 = vector.broadcast %cst_42 : f32 to vector<8x128xf32>
        %156 = arith.mulf %154, %155 : vector<8x128xf32>
        %157 = math.exp %156 : vector<8x128xf32>
        %cst_43 = arith.constant 1.000000e+00 : f32
        %158 = vector.broadcast %cst_43 : f32 to vector<8x128xf32>
        %159 = arith.addf %158, %157 : vector<8x128xf32>
        %160 = math.log %159 : vector<8x128xf32>
        %cst_44 = arith.constant 1.000000e-01 : f32
        %161 = vector.broadcast %cst_44 : f32 to vector<8x128xf32>
        %162 = arith.mulf %161, %160 : vector<8x128xf32>
        %163 = arith.subf %150, %162 : vector<8x128xf32>
        %164 = vector.extract_strided_slice %41 {offsets = [6, 0, 0], sizes = [1, 8, 128], strides = [1, 1, 1]} : vector<8x8x128xf32> to vector<1x8x128xf32>
        %165 = vector.shape_cast %164 : vector<1x8x128xf32> to vector<8x128xf32>
        %166 = arith.addf %163, %165 : vector<8x128xf32>
        %167 = arith.minimumf %arg12, %166 : vector<8x128xf32>
        %168 = arith.subf %arg12, %166 : vector<8x128xf32>
        %169 = math.absf %168 : vector<8x128xf32>
        %cst_45 = arith.constant 0.000000e+00 : f32
        %170 = vector.broadcast %cst_45 : f32 to vector<8x128xf32>
        %171 = arith.subf %170, %169 : vector<8x128xf32>
        %cst_46 = arith.constant 1.000000e+01 : f32
        %172 = vector.broadcast %cst_46 : f32 to vector<8x128xf32>
        %173 = arith.mulf %171, %172 : vector<8x128xf32>
        %174 = math.exp %173 : vector<8x128xf32>
        %cst_47 = arith.constant 1.000000e+00 : f32
        %175 = vector.broadcast %cst_47 : f32 to vector<8x128xf32>
        %176 = arith.addf %175, %174 : vector<8x128xf32>
        %177 = math.log %176 : vector<8x128xf32>
        %cst_48 = arith.constant 1.000000e-01 : f32
        %178 = vector.broadcast %cst_48 : f32 to vector<8x128xf32>
        %179 = arith.mulf %178, %177 : vector<8x128xf32>
        %180 = arith.subf %167, %179 : vector<8x128xf32>
        %181 = vector.extract_strided_slice %41 {offsets = [7, 0, 0], sizes = [1, 8, 128], strides = [1, 1, 1]} : vector<8x8x128xf32> to vector<1x8x128xf32>
        %182 = vector.shape_cast %181 : vector<1x8x128xf32> to vector<8x128xf32>
        %183 = arith.addf %180, %182 : vector<8x128xf32>
        %184 = arith.minimumf %arg13, %183 : vector<8x128xf32>
        %185 = arith.minimumf %184, %arg14 : vector<8x128xf32>
        %186 = arith.subf %185, %arg13 : vector<8x128xf32>
        %cst_49 = arith.constant 1.000000e+01 : f32
        %187 = vector.broadcast %cst_49 : f32 to vector<8x128xf32>
        %188 = arith.mulf %186, %187 : vector<8x128xf32>
        %189 = math.exp %188 : vector<8x128xf32>
        %190 = arith.subf %185, %183 : vector<8x128xf32>
        %cst_50 = arith.constant 1.000000e+01 : f32
        %191 = vector.broadcast %cst_50 : f32 to vector<8x128xf32>
        %192 = arith.mulf %190, %191 : vector<8x128xf32>
        %193 = math.exp %192 : vector<8x128xf32>
        %194 = arith.addf %189, %193 : vector<8x128xf32>
        %195 = arith.subf %185, %arg14 : vector<8x128xf32>
        %cst_51 = arith.constant 1.000000e+01 : f32
        %196 = vector.broadcast %cst_51 : f32 to vector<8x128xf32>
        %197 = arith.mulf %195, %196 : vector<8x128xf32>
        %198 = math.exp %197 : vector<8x128xf32>
        %199 = arith.addf %194, %198 : vector<8x128xf32>
        %200 = math.log %199 : vector<8x128xf32>
        %cst_52 = arith.constant 1.000000e-01 : f32
        %201 = vector.broadcast %cst_52 : f32 to vector<8x128xf32>
        %202 = arith.mulf %201, %200 : vector<8x128xf32>
        %203 = arith.subf %185, %202 : vector<8x128xf32>
        %204 = arith.addf %203, %0 : vector<8x128xf32>
        scf.yield %0, %64, %81, %98, %115, %132, %149, %166, %183, %204 : vector<8x128xf32>, vector<8x128xf32>, vector<8x128xf32>, vector<8x128xf32>, vector<8x128xf32>, vector<8x128xf32>, vector<8x128xf32>, vector<8x128xf32>, vector<8x128xf32>, vector<8x128xf32>
      }
      %c7_i32_8 = arith.constant 7 : i32
      %c0_9 = arith.constant 0 : index
      %c0_10 = arith.constant 0 : index
      %c0_11 = arith.constant 0 : index
      %c0_12 = arith.constant 0 : index
      %36 = vector.load %arg3[%c0_9, %c0_10, %c0_11, %c0_12] : memref<1x1x8x128xf32, #tpu.memory_space<vmem>>, vector<1x1x8x128xf32>
      %37 = vector.shape_cast %36 : vector<1x1x8x128xf32> to vector<8x128xf32>
      %38 = vector.shape_cast %35#9 : vector<8x128xf32> to vector<1x1x8x128xf32>
      tpu.vector_store %arg3[%c0_9, %c0_10, %c0_11, %c0_12], %38 {strides = array<i32>} : memref<1x1x8x128xf32, #tpu.memory_space<vmem>>, vector<1x1x8x128xf32>,
    } else {
    }
    %c1_i32 = arith.constant 1 : i32
    %4 = arith.cmpi eq, %arg1, %c1_i32 : i32
    %5 = arith.extui %4 : i1 to i32
    %c0_i32_1 = arith.constant 0 : i32
    %6 = arith.cmpi ne, %5, %c0_i32_1 : i32
    scf.if %6 {
      %c0 = arith.constant 0 : index
      %c7 = arith.constant 7 : index
      %c0_2 = arith.constant 0 : index
      %c0_3 = arith.constant 0 : index
      %c0_4 = arith.constant 0 : index
      %7 = vector.load %arg2[%c0, %c7, %c0_2, %c0_3, %c0_4] : memref<1x8x8x8x128xf32, #tpu.memory_space<vmem>>, vector<1x1x8x8x128xf32>
      %8 = vector.shape_cast %7 : vector<1x1x8x8x128xf32> to vector<8x8x128xf32>
      %9 = vector.extract_strided_slice %8 {offsets = [7, 0, 0], sizes = [1, 8, 128], strides = [1, 1, 1]} : vector<8x8x128xf32> to vector<1x8x128xf32>
      %10 = vector.shape_cast %9 : vector<1x8x128xf32> to vector<8x128xf32>
      %11 = arith.addf %0, %10 : vector<8x128xf32>
      %12 = vector.extract_strided_slice %8 {offsets = [6, 0, 0], sizes = [1, 8, 128], strides = [1, 1, 1]} : vector<8x8x128xf32> to vector<1x8x128xf32>
      %13 = vector.shape_cast %12 : vector<1x8x128xf32> to vector<8x128xf32>
      %14 = arith.addf %11, %13 : vector<8x128xf32>
      %15 = vector.extract_strided_slice %8 {offsets = [5, 0, 0], sizes = [1, 8, 128], strides = [1, 1, 1]} : vector<8x8x128xf32> to vector<1x8x128xf32>
      %16 = vector.shape_cast %15 : vector<1x8x128xf32> to vector<8x128xf32>
      %17 = arith.addf %14, %16 : vector<8x128xf32>
      %18 = vector.extract_strided_slice %8 {offsets = [4, 0, 0], sizes = [1, 8, 128], strides = [1, 1, 1]} : vector<8x8x128xf32> to vector<1x8x128xf32>
      %19 = vector.shape_cast %18 : vector<1x8x128xf32> to vector<8x128xf32>
      %20 = arith.addf %17, %19 : vector<8x128xf32>
      %21 = vector.extract_strided_slice %8 {offsets = [3, 0, 0], sizes = [1, 8, 128], strides = [1, 1, 1]} : vector<8x8x128xf32> to vector<1x8x128xf32>
      %22 = vector.shape_cast %21 : vector<1x8x128xf32> to vector<8x128xf32>
      %23 = arith.addf %20, %22 : vector<8x128xf32>
      %24 = vector.extract_strided_slice %8 {offsets = [2, 0, 0], sizes = [1, 8, 128], strides = [1, 1, 1]} : vector<8x8x128xf32> to vector<1x8x128xf32>
      %25 = vector.shape_cast %24 : vector<1x8x128xf32> to vector<8x128xf32>
      %26 = arith.addf %23, %25 : vector<8x128xf32>
      %27 = vector.extract_strided_slice %8 {offsets = [1, 0, 0], sizes = [1, 8, 128], strides = [1, 1, 1]} : vector<8x8x128xf32> to vector<1x8x128xf32>
      %28 = vector.shape_cast %27 : vector<1x8x128xf32> to vector<8x128xf32>
      %29 = arith.addf %26, %28 : vector<8x128xf32>
      %30 = vector.extract_strided_slice %8 {offsets = [0, 0, 0], sizes = [1, 8, 128], strides = [1, 1, 1]} : vector<8x8x128xf32> to vector<1x8x128xf32>
      %31 = vector.shape_cast %30 : vector<1x8x128xf32> to vector<8x128xf32>
      %32 = arith.addf %29, %31 : vector<8x128xf32>
      %33 = arith.addf %32, %0 : vector<8x128xf32>
      %c1_i32_5 = arith.constant 1 : i32
      %c7_i32 = arith.constant 7 : i32
      %34 = arith.addi %c1_i32_5, %c7_i32 : i32
      %c1_i32_6 = arith.constant 1 : i32
      %35:10 = scf.for %arg4 = %c1_i32_5 to %34 step %c1_i32_6 iter_args(%arg5 = %0, %arg6 = %11, %arg7 = %14, %arg8 = %17, %arg9 = %20, %arg10 = %23, %arg11 = %26, %arg12 = %29, %arg13 = %32, %arg14 = %33) -> (vector<8x128xf32>, vector<8x128xf32>, vector<8x128xf32>, vector<8x128xf32>, vector<8x128xf32>, vector<8x128xf32>, vector<8x128xf32>, vector<8x128xf32>, vector<8x128xf32>, vector<8x128xf32>)  : i32 {
        %c7_i32_12 = arith.constant 7 : i32
        %39 = arith.subi %c7_i32_12, %arg4 : i32
        %c0_13 = arith.constant 0 : index
        %40 = arith.index_cast %39 : i32 to index
        %c0_14 = arith.constant 0 : index
        %c0_15 = arith.constant 0 : index
        %c0_16 = arith.constant 0 : index
        %41 = vector.load %arg2[%c0_13, %40, %c0_14, %c0_15, %c0_16] : memref<1x8x8x8x128xf32, #tpu.memory_space<vmem>>, vector<1x1x8x8x128xf32>
        %42 = vector.shape_cast %41 : vector<1x1x8x8x128xf32> to vector<8x8x128xf32>
        %43 = arith.minimumf %arg5, %0 : vector<8x128xf32>
        %44 = arith.minimumf %43, %arg6 : vector<8x128xf32>
        %45 = arith.subf %44, %arg5 : vector<8x128xf32>
        %cst_17 = arith.constant 1.000000e+01 : f32
        %46 = vector.broadcast %cst_17 : f32 to vector<8x128xf32>
        %47 = arith.mulf %45, %46 : vector<8x128xf32>
        %48 = math.exp %47 : vector<8x128xf32>
        %49 = arith.subf %44, %0 : vector<8x128xf32>
        %cst_18 = arith.constant 1.000000e+01 : f32
        %50 = vector.broadcast %cst_18 : f32 to vector<8x128xf32>
        %51 = arith.mulf %49, %50 : vector<8x128xf32>
        %52 = math.exp %51 : vector<8x128xf32>
        %53 = arith.addf %48, %52 : vector<8x128xf32>
        %54 = arith.subf %44, %arg6 : vector<8x128xf32>
        %cst_19 = arith.constant 1.000000e+01 : f32
        %55 = vector.broadcast %cst_19 : f32 to vector<8x128xf32>
        %56 = arith.mulf %54, %55 : vector<8x128xf32>
        %57 = math.exp %56 : vector<8x128xf32>
        %58 = arith.addf %53, %57 : vector<8x128xf32>
        %59 = math.log %58 : vector<8x128xf32>
        %cst_20 = arith.constant 1.000000e-01 : f32
        %60 = vector.broadcast %cst_20 : f32 to vector<8x128xf32>
        %61 = arith.mulf %60, %59 : vector<8x128xf32>
        %62 = arith.subf %44, %61 : vector<8x128xf32>
        %63 = vector.extract_strided_slice %42 {offsets = [7, 0, 0], sizes = [1, 8, 128], strides = [1, 1, 1]} : vector<8x8x128xf32> to vector<1x8x128xf32>
        %64 = vector.shape_cast %63 : vector<1x8x128xf32> to vector<8x128xf32>
        %65 = arith.addf %62, %64 : vector<8x128xf32>
        %66 = arith.minimumf %arg6, %65 : vector<8x128xf32>
        %67 = arith.subf %arg6, %65 : vector<8x128xf32>
        %68 = math.absf %67 : vector<8x128xf32>
        %cst_21 = arith.constant 0.000000e+00 : f32
        %69 = vector.broadcast %cst_21 : f32 to vector<8x128xf32>
        %70 = arith.subf %69, %68 : vector<8x128xf32>
        %cst_22 = arith.constant 1.000000e+01 : f32
        %71 = vector.broadcast %cst_22 : f32 to vector<8x128xf32>
        %72 = arith.mulf %70, %71 : vector<8x128xf32>
        %73 = math.exp %72 : vector<8x128xf32>
        %cst_23 = arith.constant 1.000000e+00 : f32
        %74 = vector.broadcast %cst_23 : f32 to vector<8x128xf32>
        %75 = arith.addf %74, %73 : vector<8x128xf32>
        %76 = math.log %75 : vector<8x128xf32>
        %cst_24 = arith.constant 1.000000e-01 : f32
        %77 = vector.broadcast %cst_24 : f32 to vector<8x128xf32>
        %78 = arith.mulf %77, %76 : vector<8x128xf32>
        %79 = arith.subf %66, %78 : vector<8x128xf32>
        %80 = vector.extract_strided_slice %42 {offsets = [6, 0, 0], sizes = [1, 8, 128], strides = [1, 1, 1]} : vector<8x8x128xf32> to vector<1x8x128xf32>
        %81 = vector.shape_cast %80 : vector<1x8x128xf32> to vector<8x128xf32>
        %82 = arith.addf %79, %81 : vector<8x128xf32>
        %83 = arith.minimumf %arg7, %82 : vector<8x128xf32>
        %84 = arith.subf %arg7, %82 : vector<8x128xf32>
        %85 = math.absf %84 : vector<8x128xf32>
        %cst_25 = arith.constant 0.000000e+00 : f32
        %86 = vector.broadcast %cst_25 : f32 to vector<8x128xf32>
        %87 = arith.subf %86, %85 : vector<8x128xf32>
        %cst_26 = arith.constant 1.000000e+01 : f32
        %88 = vector.broadcast %cst_26 : f32 to vector<8x128xf32>
        %89 = arith.mulf %87, %88 : vector<8x128xf32>
        %90 = math.exp %89 : vector<8x128xf32>
        %cst_27 = arith.constant 1.000000e+00 : f32
        %91 = vector.broadcast %cst_27 : f32 to vector<8x128xf32>
        %92 = arith.addf %91, %90 : vector<8x128xf32>
        %93 = math.log %92 : vector<8x128xf32>
        %cst_28 = arith.constant 1.000000e-01 : f32
        %94 = vector.broadcast %cst_28 : f32 to vector<8x128xf32>
        %95 = arith.mulf %94, %93 : vector<8x128xf32>
        %96 = arith.subf %83, %95 : vector<8x128xf32>
        %97 = vector.extract_strided_slice %42 {offsets = [5, 0, 0], sizes = [1, 8, 128], strides = [1, 1, 1]} : vector<8x8x128xf32> to vector<1x8x128xf32>
        %98 = vector.shape_cast %97 : vector<1x8x128xf32> to vector<8x128xf32>
        %99 = arith.addf %96, %98 : vector<8x128xf32>
        %100 = arith.minimumf %arg8, %99 : vector<8x128xf32>
        %101 = arith.subf %arg8, %99 : vector<8x128xf32>
        %102 = math.absf %101 : vector<8x128xf32>
        %cst_29 = arith.constant 0.000000e+00 : f32
        %103 = vector.broadcast %cst_29 : f32 to vector<8x128xf32>
        %104 = arith.subf %103, %102 : vector<8x128xf32>
        %cst_30 = arith.constant 1.000000e+01 : f32
        %105 = vector.broadcast %cst_30 : f32 to vector<8x128xf32>
        %106 = arith.mulf %104, %105 : vector<8x128xf32>
        %107 = math.exp %106 : vector<8x128xf32>
        %cst_31 = arith.constant 1.000000e+00 : f32
        %108 = vector.broadcast %cst_31 : f32 to vector<8x128xf32>
        %109 = arith.addf %108, %107 : vector<8x128xf32>
        %110 = math.log %109 : vector<8x128xf32>
        %cst_32 = arith.constant 1.000000e-01 : f32
        %111 = vector.broadcast %cst_32 : f32 to vector<8x128xf32>
        %112 = arith.mulf %111, %110 : vector<8x128xf32>
        %113 = arith.subf %100, %112 : vector<8x128xf32>
        %114 = vector.extract_strided_slice %42 {offsets = [4, 0, 0], sizes = [1, 8, 128], strides = [1, 1, 1]} : vector<8x8x128xf32> to vector<1x8x128xf32>
        %115 = vector.shape_cast %114 : vector<1x8x128xf32> to vector<8x128xf32>
        %116 = arith.addf %113, %115 : vector<8x128xf32>
        %117 = arith.minimumf %arg9, %116 : vector<8x128xf32>
        %118 = arith.subf %arg9, %116 : vector<8x128xf32>
        %119 = math.absf %118 : vector<8x128xf32>
        %cst_33 = arith.constant 0.000000e+00 : f32
        %120 = vector.broadcast %cst_33 : f32 to vector<8x128xf32>
        %121 = arith.subf %120, %119 : vector<8x128xf32>
        %cst_34 = arith.constant 1.000000e+01 : f32
        %122 = vector.broadcast %cst_34 : f32 to vector<8x128xf32>
        %123 = arith.mulf %121, %122 : vector<8x128xf32>
        %124 = math.exp %123 : vector<8x128xf32>
        %cst_35 = arith.constant 1.000000e+00 : f32
        %125 = vector.broadcast %cst_35 : f32 to vector<8x128xf32>
        %126 = arith.addf %125, %124 : vector<8x128xf32>
        %127 = math.log %126 : vector<8x128xf32>
        %cst_36 = arith.constant 1.000000e-01 : f32
        %128 = vector.broadcast %cst_36 : f32 to vector<8x128xf32>
        %129 = arith.mulf %128, %127 : vector<8x128xf32>
        %130 = arith.subf %117, %129 : vector<8x128xf32>
        %131 = vector.extract_strided_slice %42 {offsets = [3, 0, 0], sizes = [1, 8, 128], strides = [1, 1, 1]} : vector<8x8x128xf32> to vector<1x8x128xf32>
        %132 = vector.shape_cast %131 : vector<1x8x128xf32> to vector<8x128xf32>
        %133 = arith.addf %130, %132 : vector<8x128xf32>
        %134 = arith.minimumf %arg10, %133 : vector<8x128xf32>
        %135 = arith.subf %arg10, %133 : vector<8x128xf32>
        %136 = math.absf %135 : vector<8x128xf32>
        %cst_37 = arith.constant 0.000000e+00 : f32
        %137 = vector.broadcast %cst_37 : f32 to vector<8x128xf32>
        %138 = arith.subf %137, %136 : vector<8x128xf32>
        %cst_38 = arith.constant 1.000000e+01 : f32
        %139 = vector.broadcast %cst_38 : f32 to vector<8x128xf32>
        %140 = arith.mulf %138, %139 : vector<8x128xf32>
        %141 = math.exp %140 : vector<8x128xf32>
        %cst_39 = arith.constant 1.000000e+00 : f32
        %142 = vector.broadcast %cst_39 : f32 to vector<8x128xf32>
        %143 = arith.addf %142, %141 : vector<8x128xf32>
        %144 = math.log %143 : vector<8x128xf32>
        %cst_40 = arith.constant 1.000000e-01 : f32
        %145 = vector.broadcast %cst_40 : f32 to vector<8x128xf32>
        %146 = arith.mulf %145, %144 : vector<8x128xf32>
        %147 = arith.subf %134, %146 : vector<8x128xf32>
        %148 = vector.extract_strided_slice %42 {offsets = [2, 0, 0], sizes = [1, 8, 128], strides = [1, 1, 1]} : vector<8x8x128xf32> to vector<1x8x128xf32>
        %149 = vector.shape_cast %148 : vector<1x8x128xf32> to vector<8x128xf32>
        %150 = arith.addf %147, %149 : vector<8x128xf32>
        %151 = arith.minimumf %arg11, %150 : vector<8x128xf32>
        %152 = arith.subf %arg11, %150 : vector<8x128xf32>
        %153 = math.absf %152 : vector<8x128xf32>
        %cst_41 = arith.constant 0.000000e+00 : f32
        %154 = vector.broadcast %cst_41 : f32 to vector<8x128xf32>
        %155 = arith.subf %154, %153 : vector<8x128xf32>
        %cst_42 = arith.constant 1.000000e+01 : f32
        %156 = vector.broadcast %cst_42 : f32 to vector<8x128xf32>
        %157 = arith.mulf %155, %156 : vector<8x128xf32>
        %158 = math.exp %157 : vector<8x128xf32>
        %cst_43 = arith.constant 1.000000e+00 : f32
        %159 = vector.broadcast %cst_43 : f32 to vector<8x128xf32>
        %160 = arith.addf %159, %158 : vector<8x128xf32>
        %161 = math.log %160 : vector<8x128xf32>
        %cst_44 = arith.constant 1.000000e-01 : f32
        %162 = vector.broadcast %cst_44 : f32 to vector<8x128xf32>
        %163 = arith.mulf %162, %161 : vector<8x128xf32>
        %164 = arith.subf %151, %163 : vector<8x128xf32>
        %165 = vector.extract_strided_slice %42 {offsets = [1, 0, 0], sizes = [1, 8, 128], strides = [1, 1, 1]} : vector<8x8x128xf32> to vector<1x8x128xf32>
        %166 = vector.shape_cast %165 : vector<1x8x128xf32> to vector<8x128xf32>
        %167 = arith.addf %164, %166 : vector<8x128xf32>
        %168 = arith.minimumf %arg12, %167 : vector<8x128xf32>
        %169 = arith.subf %arg12, %167 : vector<8x128xf32>
        %170 = math.absf %169 : vector<8x128xf32>
        %cst_45 = arith.constant 0.000000e+00 : f32
        %171 = vector.broadcast %cst_45 : f32 to vector<8x128xf32>
        %172 = arith.subf %171, %170 : vector<8x128xf32>
        %cst_46 = arith.constant 1.000000e+01 : f32
        %173 = vector.broadcast %cst_46 : f32 to vector<8x128xf32>
        %174 = arith.mulf %172, %173 : vector<8x128xf32>
        %175 = math.exp %174 : vector<8x128xf32>
        %cst_47 = arith.constant 1.000000e+00 : f32
        %176 = vector.broadcast %cst_47 : f32 to vector<8x128xf32>
        %177 = arith.addf %176, %175 : vector<8x128xf32>
        %178 = math.log %177 : vector<8x128xf32>
        %cst_48 = arith.constant 1.000000e-01 : f32
        %179 = vector.broadcast %cst_48 : f32 to vector<8x128xf32>
        %180 = arith.mulf %179, %178 : vector<8x128xf32>
        %181 = arith.subf %168, %180 : vector<8x128xf32>
        %182 = vector.extract_strided_slice %42 {offsets = [0, 0, 0], sizes = [1, 8, 128], strides = [1, 1, 1]} : vector<8x8x128xf32> to vector<1x8x128xf32>
        %183 = vector.shape_cast %182 : vector<1x8x128xf32> to vector<8x128xf32>
        %184 = arith.addf %181, %183 : vector<8x128xf32>
        %185 = arith.minimumf %arg13, %184 : vector<8x128xf32>
        %186 = arith.minimumf %185, %arg14 : vector<8x128xf32>
        %187 = arith.subf %186, %arg13 : vector<8x128xf32>
        %cst_49 = arith.constant 1.000000e+01 : f32
        %188 = vector.broadcast %cst_49 : f32 to vector<8x128xf32>
        %189 = arith.mulf %187, %188 : vector<8x128xf32>
        %190 = math.exp %189 : vector<8x128xf32>
        %191 = arith.subf %186, %184 : vector<8x128xf32>
        %cst_50 = arith.constant 1.000000e+01 : f32
        %192 = vector.broadcast %cst_50 : f32 to vector<8x128xf32>
        %193 = arith.mulf %191, %192 : vector<8x128xf32>
        %194 = math.exp %193 : vector<8x128xf32>
        %195 = arith.addf %190, %194 : vector<8x128xf32>
        %196 = arith.subf %186, %arg14 : vector<8x128xf32>
        %cst_51 = arith.constant 1.000000e+01 : f32
        %197 = vector.broadcast %cst_51 : f32 to vector<8x128xf32>
        %198 = arith.mulf %196, %197 : vector<8x128xf32>
        %199 = math.exp %198 : vector<8x128xf32>
        %200 = arith.addf %195, %199 : vector<8x128xf32>
        %201 = math.log %200 : vector<8x128xf32>
        %cst_52 = arith.constant 1.000000e-01 : f32
        %202 = vector.broadcast %cst_52 : f32 to vector<8x128xf32>
        %203 = arith.mulf %202, %201 : vector<8x128xf32>
        %204 = arith.subf %186, %203 : vector<8x128xf32>
        %205 = arith.addf %204, %0 : vector<8x128xf32>
        scf.yield %0, %65, %82, %99, %116, %133, %150, %167, %184, %205 : vector<8x128xf32>, vector<8x128xf32>, vector<8x128xf32>, vector<8x128xf32>, vector<8x128xf32>, vector<8x128xf32>, vector<8x128xf32>, vector<8x128xf32>, vector<8x128xf32>, vector<8x128xf32>
      }
      %c7_i32_7 = arith.constant 7 : i32
      %c0_8 = arith.constant 0 : index
      %c0_9 = arith.constant 0 : index
      %c0_10 = arith.constant 0 : index
      %c0_11 = arith.constant 0 : index
      %36 = vector.load %arg3[%c0_8, %c0_9, %c0_10, %c0_11] : memref<1x1x8x128xf32, #tpu.memory_space<vmem>>, vector<1x1x8x128xf32>
      %37 = vector.shape_cast %36 : vector<1x1x8x128xf32> to vector<8x128xf32>
      %38 = vector.shape_cast %35#9 : vector<8x128xf32> to vector<1x1x8x128xf32>
      tpu.vector_store %arg3[%c0_8, %c0_9, %c0_10, %c0_11], %38 {strides = array<i32>} : memref<1x1x8x128xf32, #tpu.memory_space<vmem>>, vector<1x1x8x128xf32>,
    } else {
    }
    return
  }
  func.func @transform_0(%arg0: i32, %arg1: i32) -> (i32, i32, i32, i32, i32) {
    %c0_i32 = arith.constant 0 : i32
    %c0_i32_0 = arith.constant 0 : i32
    %c0_i32_1 = arith.constant 0 : i32
    %c0_i32_2 = arith.constant 0 : i32
    %c0_i32_3 = arith.constant 0 : i32
    return %arg0, %c0_i32, %c0_i32_0, %c0_i32_1, %c0_i32_2 : i32, i32, i32, i32, i32
  }
  func.func @transform_1(%arg0: i32, %arg1: i32) -> (i32, i32, i32, i32) {
    %c0_i32 = arith.constant 0 : i32
    %c0_i32_0 = arith.constant 0 : i32
    %c0_i32_1 = arith.constant 0 : i32
    return %arg1, %arg0, %c0_i32, %c0_i32_0 : i32, i32, i32, i32
  }
}

</mosaic_0001>

<llo_original>
// kernel: otam_loss.1
$region0: #{otam_loss.1}
  #allocation0 [shape = 'u32[]', space=smem, size = 0x4, offset = 0x4, fixed_abs, tag = 'smem constant byte address 0x4 - core index']
  #allocation1 [shape = 'u32[72,128]{1,0:T(1,128)}', space=vmem, size = 0x9000, scoped, tag = 'internal scratch']
  %s0 = inlined_call_operand.vmem [shape: f32[1,8,8,8,128], index: 0, kind: input, shape index: {}]
  %s1 = inlined_call_operand.vmem [shape: f32[2,1,8,128], index: 1, kind: output, shape index: {}]
  %s2 = sld [smem:[#allocation0]]
  $region59: #{otam_loss.1} parent=0
    _
  %s4 = ssub.s32 1, %s2
  %s5 = scalar_select 0, %s4, %s2
  loop: start=0, step=1, limit=4
  $region2: #{otam_loss.1} parent=0 // loop_pre_header
    _
  $region3: #{otam_loss.1} parent=0 // loop_header
    %s7 = sphi 0, %s11
    %p8 = scmp.ge.s32.totalorder %s7, 4
    %s14 = sphi 0, %s26
    %s15 = sphi 0, %s22
    %s16 = sphi 0, %s14
    %s17 = sphi 0, %s15
    %s18 = sphi 0, %s16
    %s19 = sphi 0, %s17
    %s29 = sphi 0, %s31
    %s32 = sphi 0, %s29
    %s33 = sphi 0, %s32
    %s49 = sphi 0, %s33
    %s57 = sphi 0, %s59
    %s60 = sphi 0, %s57
    %s61 = sphi 0, %s60
    %s77 = sphi 0, %s61
  $region4: #{otam_loss.1} parent=0 // loop_header_branch
    %10 = sbr.rel (%p8) target = $region8
  $region5: #{otam_loss.1} parent=0 // loop_body
    %s12 = ssub.s32 %s7, 1
    %s13 = ssub.s32 %s7, 2
    %s20 = sadd.s32 1, %s15
    %p21 = scmp.ge.s32.totalorder %s20, 2
    %s22 = scalar_select %p21, 0, %s20
    %s23 = sadd.s32 1, %s14
    %s24 = scalar_select %p21, %s23, %s14
    %p25 = scmp.ge.s32.totalorder %s24, 1
    %s26 = scalar_select %p25, 0, %s24
    %s27 = ssub.s32 %s14, %s26
    %p28 = scmp.eq.s32.totalorder %s27, 0
    %s30 = sadd.s32 %s29, 1
    %s31 = scalar_select %p28, %s29, %s30
    %p34 = pneg %p28
    %p35 = scmp.eq.s32.totalorder %s7, 1
    %p36 = por %p34, %p35
    %p37 = scmp.ne.s32.totalorder %s29, %s32
    %p38 = scmp.eq.s32.totalorder %s7, 0
    %p39 = por %p37, %p38
    %p40 = scmp.ne.s32.totalorder %s29, %s32
    %p41 = scmp.eq.s32.totalorder %s12, 1
    %p42 = por %p40, %p41
    %p43 = scmp.ne.s32.totalorder %s32, %s33
    %p44 = scmp.eq.s32.totalorder %s12, 0
    %p45 = por %p43, %p44
    %p46 = scmp.ne.s32.totalorder %s32, %s33
    %p47 = scmp.eq.s32.totalorder %s13, 1
    %p48 = por %p46, %p47
    %p50 = scmp.ne.s32.totalorder %s33, %s49
    %p51 = scmp.eq.s32.totalorder %s13, 0
    %p52 = por %p50, %p51
    %s53 = ssub.s32 %s15, %s22
    %s54 = ssub.s32 %s14, %s26
    %s55 = sor.u32 %s53, %s54
    %p56 = scmp.eq.s32.totalorder %s55, 0
    %s58 = sadd.s32 %s57, 1
    %s59 = scalar_select %p56, %s57, %s58
    %p62 = pneg %p56
    %p63 = scmp.eq.s32.totalorder %s7, 1
    %p64 = por %p62, %p63
    %p65 = scmp.ne.s32.totalorder %s57, %s60
    %p66 = scmp.eq.s32.totalorder %s7, 0
    %p67 = por %p65, %p66
    %p68 = scmp.ne.s32.totalorder %s57, %s60
    %p69 = scmp.eq.s32.totalorder %s12, 1
    %p70 = por %p68, %p69
    %p71 = scmp.ne.s32.totalorder %s60, %s61
    %p72 = scmp.eq.s32.totalorder %s12, 0
    %p73 = por %p71, %p72
    %p74 = scmp.ne.s32.totalorder %s60, %s61
    %p75 = scmp.eq.s32.totalorder %s13, 1
    %p76 = por %p74, %p75
    %p78 = scmp.ne.s32.totalorder %s61, %s77
    %p79 = scmp.eq.s32.totalorder %s13, 0
    %p80 = por %p78, %p79
    %p81 = scmp.le.s32.totalorder 1, %s7
    %p82 = scmp.lt.s32.totalorder %s7, 3
    %p83 = pnand %p81, %p82
    %p84 = pneg %p83
    // Predicated region
    $region9: #{otam_loss.1} parent=5 // pred_check
      _
    $region10: #{otam_loss.1} parent=5 // pred_check_branch
      %86 = sbr.rel (%p83) target = $region12
    $region11: #{otam_loss.1} parent=5 // pred_region
      %s87 = ssub.s32 %s7, 1
      // Predicated region
      $region13: #{otam_loss.1} parent=11 // pred_check
        %p88 = pneg %p45
      $region14: #{otam_loss.1} parent=11 // pred_check_branch
        %90 = sbr.rel (%p88) target = $region16
      $region15: #{otam_loss.1} parent=11 // pred_region
        %p91 = scmp.lt.s32.totalorder %s16, 0
        %s92 = scalar_select %p91, %s16, 0
        %s93 = smul.addr %s92, 64
        %s94 = smul.addr %s93, 8
        %s95 = scalar_lea.vmem %s0, %s94
      $region16: #{otam_loss.1} parent=11 // pred_fallthru
        _
    $region12: #{otam_loss.1} parent=5 // pred_fallthru
      _
    %p96 = scmp.lt.s32.totalorder %s7, 2
    // Predicated region
    $region17: #{otam_loss.1} parent=5 // pred_check
      %p97 = pneg %p96
    $region18: #{otam_loss.1} parent=5 // pred_check_branch
      %99 = sbr.rel (%p97) target = $region20
    $region19: #{otam_loss.1} parent=5 // pred_region
      _
    $region20: #{otam_loss.1} parent=5 // pred_fallthru
      _
    %p100 = scmp.le.s32.totalorder 1, %s7
    %p101 = scmp.lt.s32.totalorder %s7, 3
    %p102 = pnand %p100, %p101
    %p103 = pneg %p102
    // Predicated region
    $region21: #{otam_loss.1} parent=5 // pred_check
      _
    $region22: #{otam_loss.1} parent=5 // pred_check_branch
      %105 = sbr.rel (%p102) target = $region24
    $region23: #{otam_loss.1} parent=5 // pred_region
      %s106 = ssub.s32 %s7, 1
      %p107 = scmp.lt.s32.totalorder %s16, 0
      %s108 = scalar_select %p107, %s16, 0
      %s109 = smul.addr %s108, 64
      %s110 = smul.addr %s109, 8
      %s111 = scalar_lea.vmem %s0, %s110
      %p112 = pneg %p45
      %p113 = pneg %p42
      %p114 = pneg %p73
      %p115 = pneg %p70
      %p116 = scmp.lt.s32.totalorder %s17, 1
      %s117 = scalar_select %p116, %s17, 1
      %p118 = scmp.lt.s32.totalorder %s16, 0
      %s119 = scalar_select %p118, %s16, 0
      %s120 = sadd.s32 %s119, %s117
      %s121 = smul.addr %s120, 8
      %s122 = scalar_lea.vmem %s1, %s121
      %p123 = scmp.lt.s32.totalorder %s16, 0
      %s124 = scalar_select %p123, %s16, 0
      %s125 = smul.addr %s124, 64
      %s126 = smul.addr %s125, 8
      %s127 = scalar_lea.vmem %s0, %s126
      %p128 = scmp.lt.s32.totalorder %s17, 1
      %s129 = scalar_select %p128, %s17, 1
      %p130 = scmp.lt.s32.totalorder %s16, 0
      %s131 = scalar_select %p130, %s16, 0
      %s132 = sadd.s32 %s131, %s129
      %s133 = smul.addr %s132, 8
      %s134 = scalar_lea.vmem %s1, %s133
      %p135 = scmp.eq.s32.totalorder %s17, 0
      // Predicated region
      $region25: #{otam_loss.1} parent=23 // pred_check
        %p136 = pneg %p135
      $region26: #{otam_loss.1} parent=23 // pred_check_branch
        %138 = sbr.rel (%p136) target = $region28
      $region27: #{otam_loss.1} parent=23 // pred_region
        %v139 = vld [vmem:[%s127] sm:$0xff]
        %v140 = vld [vmem:[%s127 + $0x8] sm:$0xff]
        %v141 = vld [vmem:[%s127 + $0x10] sm:$0xff]
        %v142 = vld [vmem:[%s127 + $0x18] sm:$0xff]
        %v143 = vld [vmem:[%s127 + $0x20] sm:$0xff]
        %v144 = vld [vmem:[%s127 + $0x28] sm:$0xff]
        %v145 = vld [vmem:[%s127 + $0x30] sm:$0xff]
        %v146 = vld [vmem:[%s127 + $0x38] sm:$0xff]
        %v147 = vadd.f32 %v139, 0.0
        %v148 = vadd.f32 %v147, %v140
        %v149 = vadd.f32 %v148, %v141
        %v150 = vadd.f32 %v149, %v142
        %v151 = vadd.f32 %v150, %v143
        %v152 = vadd.f32 %v151, %v144
        %v153 = vadd.f32 %v152, %v145
        %v154 = vadd.f32 %v153, %v146
        %v155 = vadd.f32 %v154, 0.0
        loop: start=1, step=1, limit=8
        $region29: #{otam_loss.1} parent=27 // loop_pre_header
          _
        $region30: #{otam_loss.1} parent=27 // loop_header
          %s157 = sphi 1, %s161
          %p158 = scmp.ge.s32.totalorder %s157, 8
          %v162 = vphi %v147, %v195
          %v163 = vphi %v148, %v208
          %v164 = vphi %v149, %v221
          %v165 = vphi %v150, %v234
          %v166 = vphi %v151, %v247
          %v167 = vphi %v152, %v260
          %v168 = vphi %v153, %v273
          %v169 = vphi %v154, %v286
          %v170 = vphi %v155, %v307
        $region31: #{otam_loss.1} parent=27 // loop_header_branch
          %160 = sbr.rel (%p158) target = $region35
        $region32: #{otam_loss.1} parent=27 // loop_body
          %s171 = smul.u32 %s157, 64
          %s172 = scalar_lea.vmem %s127, %s171
          %v173 = vld [vmem:[%s172] sm:$0xff]
          %v174 = vld [vmem:[%s172 + $0x8] sm:$0xff]
          %v175 = vld [vmem:[%s172 + $0x10] sm:$0xff]
          %v176 = vld [vmem:[%s172 + $0x18] sm:$0xff]
          %v177 = vld [vmem:[%s172 + $0x20] sm:$0xff]
          %v178 = vld [vmem:[%s172 + $0x28] sm:$0xff]
          %v179 = vld [vmem:[%s172 + $0x30] sm:$0xff]
          %v180 = vld [vmem:[%s172 + $0x38] sm:$0xff]
          %v181 = vmin.f32 %v162, 0.0
          %v182 = vmul.f32 %v181, 10.0
          %v183 = vmul.f32 %v182, 1.442695
          %v184 = vpow.pop %v183
          %v185 = vadd.f32 %v184, %v184
          %v186 = vsub.f32 %v181, %v162
          %v187 = vmul.f32 %v186, 10.0
          %v188 = vmul.f32 %v187, 1.442695
          %v189 = vpow.pop %v188
          %v190 = vadd.f32 %v185, %v189
          %v191 = vlog2.pop %v190
          %v192 = vmul.f32 %v191, 0.6931472
          %v193 = vmul.f32 %v192, 0.1
          %v194 = vsub.f32 %v181, %v193
          %v195 = vadd.f32 %v194, %v173
          %v196 = vmin.f32 %v162, %v195
          %v197 = vsub.f32 %v162, %v195
          %v198 = vand.u32 2147483647, %v197
          %v199 = vsub.f32 0.0, %v198
          %v200 = vmul.f32 %v199, 10.0
          %v201 = vmul.f32 %v200, 1.442695
          %v202 = vpow.pop %v201
          %v203 = vadd.f32 %v202, 1.0
          %v204 = vlog2.pop %v203
          %v205 = vmul.f32 %v204, 0.6931472
          %v206 = vmul.f32 %v205, 0.1
          %v207 = vsub.f32 %v196, %v206
          %v208 = vadd.f32 %v207, %v174
          %v209 = vmin.f32 %v163, %v208
          %v210 = vsub.f32 %v163, %v208
          %v211 = vand.u32 2147483647, %v210
          %v212 = vsub.f32 0.0, %v211
          %v213 = vmul.f32 %v212, 10.0
          %v214 = vmul.f32 %v213, 1.442695
          %v215 = vpow.pop %v214
          %v216 = vadd.f32 %v215, 1.0
          %v217 = vlog2.pop %v216
          %v218 = vmul.f32 %v217, 0.6931472
          %v219 = vmul.f32 %v218, 0.1
          %v220 = vsub.f32 %v209, %v219
          %v221 = vadd.f32 %v220, %v175
          %v222 = vmin.f32 %v164, %v221
          %v223 = vsub.f32 %v164, %v221
          %v224 = vand.u32 2147483647, %v223
          %v225 = vsub.f32 0.0, %v224
          %v226 = vmul.f32 %v225, 10.0
          %v227 = vmul.f32 %v226, 1.442695
          %v228 = vpow.pop %v227
          %v229 = vadd.f32 %v228, 1.0
          %v230 = vlog2.pop %v229
          %v231 = vmul.f32 %v230, 0.6931472
          %v232 = vmul.f32 %v231, 0.1
          %v233 = vsub.f32 %v222, %v232
          %v234 = vadd.f32 %v233, %v176
          %v235 = vmin.f32 %v165, %v234
          %v236 = vsub.f32 %v165, %v234
          %v237 = vand.u32 2147483647, %v236
          %v238 = vsub.f32 0.0, %v237
          %v239 = vmul.f32 %v238, 10.0
          %v240 = vmul.f32 %v239, 1.442695
          %v241 = vpow.pop %v240
          %v242 = vadd.f32 %v241, 1.0
          %v243 = vlog2.pop %v242
          %v244 = vmul.f32 %v243, 0.6931472
          %v245 = vmul.f32 %v244, 0.1
          %v246 = vsub.f32 %v235, %v245
          %v247 = vadd.f32 %v246, %v177
          %v248 = vmin.f32 %v166, %v247
          %v249 = vsub.f32 %v166, %v247
          %v250 = vand.u32 2147483647, %v249
          %v251 = vsub.f32 0.0, %v250
          %v252 = vmul.f32 %v251, 10.0
          %v253 = vmul.f32 %v252, 1.442695
          %v254 = vpow.pop %v253
          %v255 = vadd.f32 %v254, 1.0
          %v256 = vlog2.pop %v255
          %v257 = vmul.f32 %v256, 0.6931472
          %v258 = vmul.f32 %v257, 0.1
          %v259 = vsub.f32 %v248, %v258
          %v260 = vadd.f32 %v259, %v178
          %v261 = vmin.f32 %v167, %v260
          %v262 = vsub.f32 %v167, %v260
          %v263 = vand.u32 2147483647, %v262
          %v264 = vsub.f32 0.0, %v263
          %v265 = vmul.f32 %v264, 10.0
          %v266 = vmul.f32 %v265, 1.442695
          %v267 = vpow.pop %v266
          %v268 = vadd.f32 %v267, 1.0
          %v269 = vlog2.pop %v268
          %v270 = vmul.f32 %v269, 0.6931472
          %v271 = vmul.f32 %v270, 0.1
          %v272 = vsub.f32 %v261, %v271
          %v273 = vadd.f32 %v272, %v179
          %v274 = vmin.f32 %v168, %v273
          %v275 = vsub.f32 %v168, %v273
          %v276 = vand.u32 2147483647, %v275
          %v277 = vsub.f32 0.0, %v276
          %v278 = vmul.f32 %v277, 10.0
          %v279 = vmul.f32 %v278, 1.442695
          %v280 = vpow.pop %v279
          %v281 = vadd.f32 %v280, 1.0
          %v282 = vlog2.pop %v281
          %v283 = vmul.f32 %v282, 0.6931472
          %v284 = vmul.f32 %v283, 0.1
          %v285 = vsub.f32 %v274, %v284
          %v286 = vadd.f32 %v285, %v180
          %v287 = vmin.f32 %v169, %v286
          %v288 = vmin.f32 %v287, %v170
          %v289 = vsub.f32 %v288, %v169
          %v290 = vmul.f32 %v289, 10.0
          %v291 = vmul.f32 %v290, 1.442695
          %v292 = vpow.pop %v291
          %v293 = vsub.f32 %v288, %v286
          %v294 = vmul.f32 %v293, 10.0
          %v295 = vmul.f32 %v294, 1.442695
          %v296 = vpow.pop %v295
          %v297 = vadd.f32 %v292, %v296
          %v298 = vsub.f32 %v288, %v170
          %v299 = vmul.f32 %v298, 10.0
          %v300 = vmul.f32 %v299, 1.442695
          %v301 = vpow.pop %v300
          %v302 = vadd.f32 %v297, %v301
          %v303 = vlog2.pop %v302
          %v304 = vmul.f32 %v303, 0.6931472
          %v305 = vmul.f32 %v304, 0.1
          %v306 = vsub.f32 %v288, %v305
          %v307 = vadd.f32 %v306, 0.0
        $region33: #{otam_loss.1} parent=27 // loop_footer
          %s161 = sadd.s32 1, %s157
        $region34: #{otam_loss.1} parent=27 // loop_footer_branch
          %156 = sbr.rel target = $region30
        $region35: #{otam_loss.1} parent=27 // loop_exit
          _
        %308 = vst [vmem:[%s134] sm:$0xff] %v170
      $region28: #{otam_loss.1} parent=23 // pred_fallthru
        _
      %p309 = scmp.eq.s32.totalorder %s17, 1
      // Predicated region
      $region36: #{otam_loss.1} parent=23 // pred_check
        %p310 = pneg %p309
      $region37: #{otam_loss.1} parent=23 // pred_check_branch
        %312 = sbr.rel (%p310) target = $region39
      $region38: #{otam_loss.1} parent=23 // pred_region
        %s313 = scalar_lea.vmem %s127, 448
        %v314 = vld [vmem:[%s313] sm:$0xff]
        %v315 = vld [vmem:[%s313 + $0x8] sm:$0xff]
        %v316 = vld [vmem:[%s313 + $0x10] sm:$0xff]
        %v317 = vld [vmem:[%s313 + $0x18] sm:$0xff]
        %v318 = vld [vmem:[%s313 + $0x20] sm:$0xff]
        %v319 = vld [vmem:[%s313 + $0x28] sm:$0xff]
        %v320 = vld [vmem:[%s313 + $0x30] sm:$0xff]
        %v321 = vld [vmem:[%s313 + $0x38] sm:$0xff]
        %v322 = vadd.f32 %v321, 0.0
        %v323 = vadd.f32 %v322, %v320
        %v324 = vadd.f32 %v323, %v319
        %v325 = vadd.f32 %v324, %v318
        %v326 = vadd.f32 %v325, %v317
        %v327 = vadd.f32 %v326, %v316
        %v328 = vadd.f32 %v327, %v315
        %v329 = vadd.f32 %v328, %v314
        %v330 = vadd.f32 %v329, 0.0
        loop: start=1, step=1, limit=8
        $region40: #{otam_loss.1} parent=38 // loop_pre_header
          _
        $region41: #{otam_loss.1} parent=38 // loop_header
          %s332 = sphi 1, %s336
          %p333 = scmp.ge.s32.totalorder %s332, 8
          %v337 = vphi %v322, %v371
          %v338 = vphi %v323, %v384
          %v339 = vphi %v324, %v397
          %v340 = vphi %v325, %v410
          %v341 = vphi %v326, %v423
          %v342 = vphi %v327, %v436
          %v343 = vphi %v328, %v449
          %v344 = vphi %v329, %v462
          %v345 = vphi %v330, %v483
        $region42: #{otam_loss.1} parent=38 // loop_header_branch
          %335 = sbr.rel (%p333) target = $region46
        $region43: #{otam_loss.1} parent=38 // loop_body
          %s346 = ssub.s32 7, %s332
          %s347 = smul.u32 %s346, 64
          %s348 = scalar_lea.vmem %s127, %s347
          %v349 = vld [vmem:[%s348] sm:$0xff]
          %v350 = vld [vmem:[%s348 + $0x8] sm:$0xff]
          %v351 = vld [vmem:[%s348 + $0x10] sm:$0xff]
          %v352 = vld [vmem:[%s348 + $0x18] sm:$0xff]
          %v353 = vld [vmem:[%s348 + $0x20] sm:$0xff]
          %v354 = vld [vmem:[%s348 + $0x28] sm:$0xff]
          %v355 = vld [vmem:[%s348 + $0x30] sm:$0xff]
          %v356 = vld [vmem:[%s348 + $0x38] sm:$0xff]
          %v357 = vmin.f32 %v337, 0.0
          %v358 = vmul.f32 %v357, 10.0
          %v359 = vmul.f32 %v358, 1.442695
          %v360 = vpow.pop %v359
          %v361 = vadd.f32 %v360, %v360
          %v362 = vsub.f32 %v357, %v337
          %v363 = vmul.f32 %v362, 10.0
          %v364 = vmul.f32 %v363, 1.442695
          %v365 = vpow.pop %v364
          %v366 = vadd.f32 %v361, %v365
          %v367 = vlog2.pop %v366
          %v368 = vmul.f32 %v367, 0.6931472
          %v369 = vmul.f32 %v368, 0.1
          %v370 = vsub.f32 %v357, %v369
          %v371 = vadd.f32 %v370, %v356
          %v372 = vmin.f32 %v337, %v371
          %v373 = vsub.f32 %v337, %v371
          %v374 = vand.u32 2147483647, %v373
          %v375 = vsub.f32 0.0, %v374
          %v376 = vmul.f32 %v375, 10.0
          %v377 = vmul.f32 %v376, 1.442695
          %v378 = vpow.pop %v377
          %v379 = vadd.f32 %v378, 1.0
          %v380 = vlog2.pop %v379
          %v381 = vmul.f32 %v380, 0.6931472
          %v382 = vmul.f32 %v381, 0.1
          %v383 = vsub.f32 %v372, %v382
          %v384 = vadd.f32 %v383, %v355
          %v385 = vmin.f32 %v338, %v384
          %v386 = vsub.f32 %v338, %v384
          %v387 = vand.u32 2147483647, %v386
          %v388 = vsub.f32 0.0, %v387
          %v389 = vmul.f32 %v388, 10.0
          %v390 = vmul.f32 %v389, 1.442695
          %v391 = vpow.pop %v390
          %v392 = vadd.f32 %v391, 1.0
          %v393 = vlog2.pop %v392
          %v394 = vmul.f32 %v393, 0.6931472
          %v395 = vmul.f32 %v394, 0.1
          %v396 = vsub.f32 %v385, %v395
          %v397 = vadd.f32 %v396, %v354
          %v398 = vmin.f32 %v339, %v397
          %v399 = vsub.f32 %v339, %v397
          %v400 = vand.u32 2147483647, %v399
          %v401 = vsub.f32 0.0, %v400
          %v402 = vmul.f32 %v401, 10.0
          %v403 = vmul.f32 %v402, 1.442695
          %v404 = vpow.pop %v403
          %v405 = vadd.f32 %v404, 1.0
          %v406 = vlog2.pop %v405
          %v407 = vmul.f32 %v406, 0.6931472
          %v408 = vmul.f32 %v407, 0.1
          %v409 = vsub.f32 %v398, %v408
          %v410 = vadd.f32 %v409, %v353
          %v411 = vmin.f32 %v340, %v410
          %v412 = vsub.f32 %v340, %v410
          %v413 = vand.u32 2147483647, %v412
          %v414 = vsub.f32 0.0, %v413
          %v415 = vmul.f32 %v414, 10.0
          %v416 = vmul.f32 %v415, 1.442695
          %v417 = vpow.pop %v416
          %v418 = vadd.f32 %v417, 1.0
          %v419 = vlog2.pop %v418
          %v420 = vmul.f32 %v419, 0.6931472
          %v421 = vmul.f32 %v420, 0.1
          %v422 = vsub.f32 %v411, %v421
          %v423 = vadd.f32 %v422, %v352
          %v424 = vmin.f32 %v341, %v423
          %v425 = vsub.f32 %v341, %v423
          %v426 = vand.u32 2147483647, %v425
          %v427 = vsub.f32 0.0, %v426
          %v428 = vmul.f32 %v427, 10.0
          %v429 = vmul.f32 %v428, 1.442695
          %v430 = vpow.pop %v429
          %v431 = vadd.f32 %v430, 1.0
          %v432 = vlog2.pop %v431
          %v433 = vmul.f32 %v432, 0.6931472
          %v434 = vmul.f32 %v433, 0.1
          %v435 = vsub.f32 %v424, %v434
          %v436 = vadd.f32 %v435, %v351
          %v437 = vmin.f32 %v342, %v436
          %v438 = vsub.f32 %v342, %v436
          %v439 = vand.u32 2147483647, %v438
          %v440 = vsub.f32 0.0, %v439
          %v441 = vmul.f32 %v440, 10.0
          %v442 = vmul.f32 %v441, 1.442695
          %v443 = vpow.pop %v442
          %v444 = vadd.f32 %v443, 1.0
          %v445 = vlog2.pop %v444
          %v446 = vmul.f32 %v445, 0.6931472
          %v447 = vmul.f32 %v446, 0.1
          %v448 = vsub.f32 %v437, %v447
          %v449 = vadd.f32 %v448, %v350
          %v450 = vmin.f32 %v343, %v449
          %v451 = vsub.f32 %v343, %v449
          %v452 = vand.u32 2147483647, %v451
          %v453 = vsub.f32 0.0, %v452
          %v454 = vmul.f32 %v453, 10.0
          %v455 = vmul.f32 %v454, 1.442695
          %v456 = vpow.pop %v455
          %v457 = vadd.f32 %v456, 1.0
          %v458 = vlog2.pop %v457
          %v459 = vmul.f32 %v458, 0.6931472
          %v460 = vmul.f32 %v459, 0.1
          %v461 = vsub.f32 %v450, %v460
          %v462 = vadd.f32 %v461, %v349
          %v463 = vmin.f32 %v344, %v462
          %v464 = vmin.f32 %v463, %v345
          %v465 = vsub.f32 %v464, %v344
          %v466 = vmul.f32 %v465, 10.0
          %v467 = vmul.f32 %v466, 1.442695
          %v468 = vpow.pop %v467
          %v469 = vsub.f32 %v464, %v462
          %v470 = vmul.f32 %v469, 10.0
          %v471 = vmul.f32 %v470, 1.442695
          %v472 = vpow.pop %v471
          %v473 = vadd.f32 %v468, %v472
          %v474 = vsub.f32 %v464, %v345
          %v475 = vmul.f32 %v474, 10.0
          %v476 = vmul.f32 %v475, 1.442695
          %v477 = vpow.pop %v476
          %v478 = vadd.f32 %v473, %v477
          %v479 = vlog2.pop %v478
          %v480 = vmul.f32 %v479, 0.6931472
          %v481 = vmul.f32 %v480, 0.1
          %v482 = vsub.f32 %v464, %v481
          %v483 = vadd.f32 %v482, 0.0
        $region44: #{otam_loss.1} parent=38 // loop_footer
          %s336 = sadd.s32 1, %s332
        $region45: #{otam_loss.1} parent=38 // loop_footer_branch
          %331 = sbr.rel target = $region41
        $region46: #{otam_loss.1} parent=38 // loop_exit
          _
        %484 = vst [vmem:[%s134] sm:$0xff] %v345
      $region39: #{otam_loss.1} parent=23 // pred_fallthru
        _
      %p485 = scmp.lt.s32.totalorder %s17, 1
      %s486 = scalar_select %p485, %s17, 1
      %p487 = scmp.lt.s32.totalorder %s16, 0
      %s488 = scalar_select %p487, %s16, 0
      %s489 = sadd.s32 %s488, %s486
      %s490 = smul.addr %s489, 8
      %s491 = scalar_lea.vmem %s1, %s490
      // Predicated region
      $region47: #{otam_loss.1} parent=23 // pred_check
        %p492 = pneg %p70
      $region48: #{otam_loss.1} parent=23 // pred_check_branch
        %494 = sbr.rel (%p492) target = $region50
      $region49: #{otam_loss.1} parent=23 // pred_region
        _
      $region50: #{otam_loss.1} parent=23 // pred_fallthru
        _
    $region24: #{otam_loss.1} parent=5 // pred_fallthru
      _
    %p495 = scmp.le.s32.totalorder 2, %s7
    // Predicated region
    $region51: #{otam_loss.1} parent=5 // pred_check
      %p496 = pneg %p495
    $region52: #{otam_loss.1} parent=5 // pred_check_branch
      %498 = sbr.rel (%p496) target = $region54
    $region53: #{otam_loss.1} parent=5 // pred_region
      %s499 = ssub.s32 %s7, 2
      // Predicated region
      $region55: #{otam_loss.1} parent=53 // pred_check
        %p500 = pneg %p76
      $region56: #{otam_loss.1} parent=53 // pred_check_branch
        %502 = sbr.rel (%p500) target = $region58
      $region57: #{otam_loss.1} parent=53 // pred_region
        %p503 = scmp.lt.s32.totalorder %s19, 1
        %s504 = scalar_select %p503, %s19, 1
        %p505 = scmp.lt.s32.totalorder %s18, 0
        %s506 = scalar_select %p505, %s18, 0
        %s507 = sadd.s32 %s506, %s504
        %s508 = smul.addr %s507, 8
        %s509 = scalar_lea.vmem %s1, %s508
      $region58: #{otam_loss.1} parent=53 // pred_fallthru
        _
    $region54: #{otam_loss.1} parent=5 // pred_fallthru
      _
  $region6: #{otam_loss.1} parent=0 // loop_footer
    %s11 = sadd.s32 1, %s7
  $region7: #{otam_loss.1} parent=0 // loop_footer_branch
    %6 = sbr.rel target = $region3
  $region8: #{otam_loss.1} parent=0 // loop_exit
    _

</llo_original>
